<compile_context>
chip_gen: v5e
topology: v5e:2x2
jax: 0.10.0
libtpu: 0.0.40
codegen_flags: <defaults>
</compile_context>

<pallas_src>
import jax
import jax.numpy as jnp
from jax.experimental import pallas as pl
from jax.experimental.pallas import tpu as pltpu


def _attn_kernel(x_ref, ctx_ref, w_ref):
    # x_ref block: (Bblk, T, H) batch slab for this grid step.
    x = x_ref[...].astype(jnp.float32)            # (Bblk, T, H)
    T = x.shape[1]

    # query = last timestep of each row: (Bblk, H)
    q = x[:, T - 1, :]

    # scores[b, t] = sum_h x[b, t, h] * q[b, h]   (VPU mul + XLU lane-reduce;
    # avoids an M=1 MXU matmul and the x.T transpose)
    scores = jnp.sum(x * q[:, None, :], axis=-1)  # (Bblk, T)

    # Numerically stable softmax over T. Exact reciprocal: the weights are an
    # externally consumed output (and asserted at 1e-5 vs the reference).
    m = jnp.max(scores, axis=-1, keepdims=True)
    e = jnp.exp(scores - m)
    denom = jnp.sum(e, axis=-1, keepdims=True)
    w = e * pl.reciprocal(denom, approx=False)    # (Bblk, T)

    # context[b, h] = sum_t w[b, t] * x[b, t, h]  (VPU mul + sublane-reduce)
    ctx = jnp.sum(w[:, :, None] * x, axis=1)      # (Bblk, H)

    ctx_ref[...] = ctx.astype(ctx_ref.dtype)
    w_ref[...] = w.astype(w_ref.dtype)


def _choose_bblk(B, T, H, itemsize):
    """Largest batch tile that fits a conservative VMEM budget (v7x-safe)."""
    if B <= 8:
        return B  # single full-extent block; no padding/tiling needed
    budget = 32 * 1024 * 1024  # well under 64 MiB (v7x) even double-buffered
    per_row = (T * H + H + T) * itemsize
    bblk = max(8, ((budget // (2 * per_row)) // 8) * 8)
    # Keep >= 2 grid steps so the 'parallel' batch axis shards across v7x's
    # two TensorCores instead of leaving one idle.
    half = max(8, ((-(-B // 2)) + 7) // 8 * 8)
    return min(bblk, half)


def dot_product_attention(x):
    """x: (B, T, H) -> (context (B, 1, H), weights (B, 1, T))"""
    B, T, H = x.shape
    itemsize = jnp.dtype(x.dtype).itemsize
    bblk = _choose_bblk(B, T, H, itemsize)
    n_blocks = -(-B // bblk)
    B_pad = n_blocks * bblk

    if B_pad != B:
        # Zero-pad the batch so every block is full; padded rows are discarded.
        x_in = jnp.concatenate(
            [x, jnp.zeros((B_pad - B, T, H), dtype=x.dtype)], axis=0)
    else:
        x_in = x

    ctx2d, w2d = pl.pallas_call(
        _attn_kernel,
        out_shape=(
            jax.ShapeDtypeStruct((B_pad, H), x.dtype),
            jax.ShapeDtypeStruct((B_pad, T), x.dtype),
        ),
        grid_spec=pltpu.PrefetchScalarGridSpec(
            num_scalar_prefetch=0,
            grid=(n_blocks,),
            in_specs=[pl.BlockSpec((bblk, T, H), lambda b: (b, 0, 0))],
            out_specs=[
                pl.BlockSpec((bblk, H), lambda b: (b, 0)),
                pl.BlockSpec((bblk, T), lambda b: (b, 0)),
            ],
        ),
        compiler_params=pltpu.CompilerParams(
            dimension_semantics=("parallel",),
            vmem_limit_bytes=48 * 1024 * 1024,
        ),
    )(x_in)

    ctx = ctx2d[:B].reshape(B, 1, H)
    w = w2d[:B].reshape(B, 1, T)
    return ctx, w


def _reference(x):
    # Pure-JAX reference mirroring the PyTorch forward.
    query = x[:, -1:, :]                                    # (B, 1, H)
    scores = jnp.einsum("bqh,bth->bqt", query, x)           # (B, 1, T)
    weights = jax.nn.softmax(scores, axis=-1)               # (B, 1, T)
    context = jnp.einsum("bqt,bth->bqh", weights, x)        # (B, 1, H)
    return context, weights


if __name__ == "__main__":
    key = jax.random.PRNGKey(0)

    # Small case (single full-batch block).
    B, T, H = 2, 8, 32
    x = jax.random.normal(key, (B, T, H), dtype=jnp.float32)
    ctx, w = dot_product_attention(x)
    jax.block_until_ready((ctx, w))
    ctx_ref, w_ref = _reference(x)
    assert ctx.shape == (B, 1, H) and w.shape == (B, 1, T)
    assert jnp.allclose(ctx, ctx_ref, atol=1e-5, rtol=1e-5)
    assert jnp.allclose(w, w_ref, atol=1e-5, rtol=1e-5)

    # Larger case exercising the batch-tiled multi-step grid + padding path.
    B2, T2, H2 = 20, 8, 32
    x2 = jax.random.normal(jax.random.PRNGKey(1), (B2, T2, H2), dtype=jnp.float32)
    ctx2, w2 = dot_product_attention(x2)
    jax.block_until_ready((ctx2, w2))
    ctx2_ref, w2_ref = _reference(x2)
    assert ctx2.shape == (B2, 1, H2) and w2.shape == (B2, 1, T2)
    assert jnp.allclose(ctx2, ctx2_ref, atol=1e-5, rtol=1e-5)
    assert jnp.allclose(w2, w2_ref, atol=1e-5, rtol=1e-5)

    print("KERNEL_OK")
</pallas_src>

<mosaic_0001>
module attributes {stable_mosaic.version = 11 : i64} {
  func.func @_attn_kernel(%arg0: i32, %arg1: memref<2x8x32xf32, #tpu.memory_space<vmem>>, %arg2: memref<2x32xf32, #tpu.memory_space<vmem>>, %arg3: memref<2x8xf32, #tpu.memory_space<vmem>>) attributes {dimension_semantics = [#tpu.dimension_semantics<parallel>], iteration_bounds = array<i64: 1>, scalar_prefetch = 0 : i64, scratch_operands = 0 : i64, tpu.core_type = #tpu.core_type<tc>, window_params = [{transform_indices = @transform_0, window_bounds = array<i64: 2, 8, 32>}, {transform_indices = @transform_1, window_bounds = array<i64: 2, 32>}, {transform_indices = @transform_2, window_bounds = array<i64: 2, 8>}]} {
    %c0 = arith.constant 0 : index
    %c0_0 = arith.constant 0 : index
    %c0_1 = arith.constant 0 : index
    %0 = vector.load %arg1[%c0, %c0_0, %c0_1] : memref<2x8x32xf32, #tpu.memory_space<vmem>>, vector<2x8x32xf32>
    %1 = vector.extract_strided_slice %0 {offsets = [0, 7, 0], sizes = [2, 1, 32], strides = [1, 1, 1]} : vector<2x8x32xf32> to vector<2x1x32xf32>
    %2 = vector.shape_cast %1 : vector<2x1x32xf32> to vector<2x32xf32>
    %3 = vector.shape_cast %2 : vector<2x32xf32> to vector<2x1x32xf32>
    %4 = vector.broadcast %3 : vector<2x1x32xf32> to vector<2x8x32xf32>
    %5 = arith.mulf %0, %4 : vector<2x8x32xf32>
    %cst = arith.constant dense<0.000000e+00> : vector<2x8xf32>
    %6 = vector.multi_reduction <add>, %5, %cst [2] : vector<2x8x32xf32> to vector<2x8xf32>
    %cst_2 = arith.constant dense<0xFF800000> : vector<2xf32>
    %7 = vector.multi_reduction <maximumf>, %6, %cst_2 [1] : vector<2x8xf32> to vector<2xf32>
    %8 = vector.shape_cast %7 : vector<2xf32> to vector<2x1xf32>
    %9 = vector.broadcast %8 : vector<2x1xf32> to vector<2x8xf32>
    %10 = arith.subf %6, %9 : vector<2x8xf32>
    %11 = math.exp %10 : vector<2x8xf32>
    %cst_3 = arith.constant dense<0.000000e+00> : vector<2xf32>
    %12 = vector.multi_reduction <add>, %11, %cst_3 [1] : vector<2x8xf32> to vector<2xf32>
    %13 = vector.shape_cast %12 : vector<2xf32> to vector<2x1xf32>
    %14 = tpu.reciprocal %13 : vector<2x1xf32> -> vector<2x1xf32>
    %15 = vector.broadcast %14 : vector<2x1xf32> to vector<2x8xf32>
    %16 = arith.mulf %11, %15 : vector<2x8xf32>
    %17 = vector.shape_cast %16 : vector<2x8xf32> to vector<2x8x1xf32>
    %18 = vector.broadcast %17 : vector<2x8x1xf32> to vector<2x8x32xf32>
    %19 = arith.mulf %18, %0 : vector<2x8x32xf32>
    %cst_4 = arith.constant dense<0.000000e+00> : vector<2x32xf32>
    %20 = vector.multi_reduction <add>, %19, %cst_4 [1] : vector<2x8x32xf32> to vector<2x32xf32>
    %c0_5 = arith.constant 0 : index
    %c0_6 = arith.constant 0 : index
    %21 = vector.load %arg2[%c0_5, %c0_6] : memref<2x32xf32, #tpu.memory_space<vmem>>, vector<2x32xf32>
    tpu.vector_store %arg2[%c0_5, %c0_6], %20 {strides = array<i32>} : memref<2x32xf32, #tpu.memory_space<vmem>>, vector<2x32xf32>,
    %c0_7 = arith.constant 0 : index
    %c0_8 = arith.constant 0 : index
    %22 = vector.load %arg3[%c0_7, %c0_8] : memref<2x8xf32, #tpu.memory_space<vmem>>, vector<2x8xf32>
    tpu.vector_store %arg3[%c0_7, %c0_8], %16 {strides = array<i32>} : memref<2x8xf32, #tpu.memory_space<vmem>>, vector<2x8xf32>,
    return
  }
  func.func @transform_0(%arg0: i32) -> (i32, i32, i32) {
    %c0_i32 = arith.constant 0 : i32
    %c0_i32_0 = arith.constant 0 : i32
    %c0_i32_1 = arith.constant 0 : i32
    return %arg0, %c0_i32, %c0_i32_0 : i32, i32, i32
  }
  func.func @transform_1(%arg0: i32) -> (i32, i32) {
    %c0_i32 = arith.constant 0 : i32
    %c0_i32_0 = arith.constant 0 : i32
    return %arg0, %c0_i32 : i32, i32
  }
  func.func @transform_2(%arg0: i32) -> (i32, i32) {
    %c0_i32 = arith.constant 0 : i32
    %c0_i32_0 = arith.constant 0 : i32
    return %arg0, %c0_i32 : i32, i32
  }
}

</mosaic_0001>

<llo_original>
// kernel: tpu_custom_call.1
$region0: #{tpu_custom_call.1}
  #allocation0 [shape = 'u32[]', space=smem, size = 0x4, offset = 0x4, fixed_abs, tag = 'smem constant byte address 0x4 - core index']
  #allocation1 [shape = 'u32[72,128]{1,0:T(1,128)}', space=vmem, size = 0x9000, scoped, tag = 'internal scratch']
  %s0 = inlined_call_operand.hbm [shape: f32[2,8,32], index: 0, kind: input, shape index: {}]
  %s1 = inlined_call_operand.hbm [shape: f32[2,32], index: 1, kind: output, shape index: {0}]
  %s2 = inlined_call_operand.hbm [shape: f32[2,8], index: 2, kind: output, shape index: {1}]
  %3 = xla_tuple %s1, %s2
  %s4 = sld [smem:[#allocation0]]
  $region26: #{tpu_custom_call.1} parent=0
    _
  %s6 = ssub.s32 1, %s4
  %s7 = scalar_select 0, %s6, %s4
  $region1: #{tpu_custom_call.1} parent=0
    #allocation2 [shape = 'u8[8192]{0}', space=vmem, size = 0x2000, scoped, tag = 'input window, operand 0, single buffered']
    #allocation3 [shape = 's32[1]{0}', space=sflag, size = 0x4, scoped, tag = 'scoped memory for tpu_custom_call.1']
    #allocation4 [shape = 's32[1]{0}', space=sflag, size = 0x4, scoped, tag = 'scoped memory for tpu_custom_call.1']
    #allocation5 [shape = 'u8[1024]{0}', space=vmem, size = 0x400, scoped, tag = 'output window, operand 0, single buffered']
    #allocation6 [shape = 'u8[1024]{0}', space=vmem, size = 0x400, scoped, tag = 'output window, operand 1, single buffered']
    #allocation7 [shape = 's32[1]{0}', space=sflag, size = 0x4, scoped, tag = 'scoped memory for tpu_custom_call.1']
    %8 = vsyncpa [#allocation3], 0
    %9 = vsyncpa [#allocation4], 0
    %10 = vsyncpa [#allocation7], 0
    // Predicated region
    $region2: #{tpu_custom_call.1} parent=1 // pred_check
      _
    $region3: #{tpu_custom_call.1} parent=1 // pred_check_branch
      %12 = sbr.rel (0) target = $region5
    $region4: #{tpu_custom_call.1} parent=1 // pred_region
      %14 = vsyncadd [#allocation3], 0
      %s15 = sshll.u32 %s0, 4
      %s16 = int_to_ptr.hbm [resolvable:$true] %s15
      %s17 = sshll.u32 [#allocation2], 4
      %s18 = int_to_ptr.vmem [resolvable:$true] %s17
      %23 = dma.hbm_to_vmem [thread:$0]  %s16, 256, %s18, [#allocation3], 128, 128, 8
    $region5: #{tpu_custom_call.1} parent=1 // pred_fallthru
      _
    // Predicated region
    $region6: #{tpu_custom_call.1} parent=1 // pred_check
      _
    $region7: #{tpu_custom_call.1} parent=1 // pred_check_branch
      %25 = sbr.rel (0) target = $region9
    $region8: #{tpu_custom_call.1} parent=1 // pred_region
      %27 = dma.done [#allocation3], 256
    $region9: #{tpu_custom_call.1} parent=1 // pred_fallthru
      _
    %v28 = vld [vmem:[#allocation2] sm:$0xff]
    %v29 = vld [vmem:[#allocation2 + $0x8] sm:$0xff]
    %v30 = vperm.slane %v28, 7
    %v31 = vperm.slane %v29, 7
    %v32 = vmul.f32 %v28, %v30
    %v33 = vmul.f32 %v29, %v31
    %vm34 = vcmask 261120
    %v35 = vsel %vm34, %v32, 0.0
    %36 = vadd.xlane.f32.xlu0 %v35
    %v37 = vpop.xlane.xlu0 %36
    %v38 = vsel %vm34, %v33, 0.0
    %39 = vadd.xlane.f32.xlu0 %v38
    %v40 = vpop.xlane.xlu0 %39
    %v43 = vlaneseq
    %v44 = vand.u32 %v43, 127
    %v45 = vperm.slane %v37, %v44
    %v46 = vperm.slane %v40, %v44
    %vm47 = vcmask 1041409
    %v48 = vsel %vm47, %v46, %v45
    %vm50 = vcmask 58368
    %v51 = vsel %vm50, %v48, -inf
    %52 = vmax.xlane.f32.xlu0 %v51
    %v53 = vpop.xlane.xlu0 %52
    %v55 = vperm.slane %v53, 0
    %v56 = vperm.slane %v53, 1
    %v59 = vsub.f32 %v37, %v55
    %v60 = vsub.f32 %v40, %v56
    %v61 = vmul.f32 %v59, 1.442695
    %v62 = vpow.pop %v61
    %v63 = vmul.f32 %v60, 1.442695
    %v64 = vpow.pop %v63
    %67 = vset.pattern.permute.xlu0 0
    %68 = vperm.xlu0 %67, %v62
    %v69 = vpop.permute.xlu0 %68
    %70 = vset.pattern.permute.xlu0 0
    %71 = vperm.xlu0 %70, %v64
    %v72 = vpop.permute.xlu0 %71
    %v73 = vperm.slane %v69, %v44
    %v74 = vperm.slane %v72, %v44
    %v75 = vsel %vm47, %v74, %v73
    %v77 = vsel %vm50, %v75, 0.0
    %78 = vadd.xlane.f32.xlu0 %v77
    %v79 = vpop.xlane.xlu0 %78
    %v80 = vrcp.pop %v79
    %v81 = vmul.f32 %v79, %v80
    %v82 = vsub.f32 1.0, %v81
    %v83 = vmul.f32 %v80, %v82
    %v84 = vadd.f32 %v80, %v83
    %vm85 = vweird.f32 %v79
    %vm86 = vweird.f32 %v80
    %vm87 = vmor %vm85, %vm86
    %v88 = vsel %vm87, %v80, %v84
    %v89 = vand.u32 2147483647, %v79
    %vm90 = vcmp.eq.f32.partialorder %v89, 8.507059e+37
    %v91 = vand.u32 %v79, 2147483648
    %v92 = vor.u32 1.1754944e-38, %v91
    %v93 = vsel %vm90, %v92, %v88
    %v95 = vperm.slane %v93, 0
    %v96 = vperm.slane %v93, 1
    %v99 = vmul.f32 %v62, %v95
    %v100 = vmul.f32 %v64, %v96
    %102 = vset.pattern.permute.xlu0 0
    %103 = vperm.xlu0 %102, %v99
    %v104 = vpop.permute.xlu0 %103
    %107 = vset.pattern.permute.xlu0 0
    %108 = vperm.xlu0 %107, %v100
    %v109 = vpop.permute.xlu0 %108
    %v111 = vmul.f32 %v104, %v28
    %v112 = vmul.f32 %v109, %v29
    %v113 = vsel %vm34, %v111, 0.0
    %v114 = vrot.slane %v113, 4
    %v115 = vadd.f32 %v113, %v114
    %v116 = vrot.slane %v115, 2
    %v117 = vadd.f32 %v115, %v116
    %v118 = vrot.slane %v117, 1
    %v119 = vadd.f32 %v117, %v118
    %v120 = vsel %vm34, %v112, 0.0
    %v121 = vrot.slane %v120, 4
    %v122 = vadd.f32 %v120, %v121
    %v123 = vrot.slane %v122, 2
    %v124 = vadd.f32 %v122, %v123
    %v125 = vrot.slane %v124, 1
    %v126 = vadd.f32 %v124, %v125
    %v129 = vsel %vm47, %v126, %v119
    %vm131 = vcmask 254976
    %132 = vst.msk [vmem:[#allocation5] sm:$0x3] %vm131, %v129
    %v133 = vperm.slane %v104, %v44
    %v134 = vperm.slane %v109, %v44
    %v135 = vsel %vm47, %v134, %v133
    %137 = vst.msk [vmem:[#allocation6] sm:$0x3] %vm50, %v135
    // Predicated region
    $region10: #{tpu_custom_call.1} parent=1 // pred_check
      _
    $region11: #{tpu_custom_call.1} parent=1 // pred_check_branch
      %139 = sbr.rel (0) target = $region13
    $region12: #{tpu_custom_call.1} parent=1 // pred_region
      %141 = vsyncadd [#allocation4], 0
      %s143 = sshll.u32 [#allocation5], 4
      %s144 = int_to_ptr.vmem [resolvable:$true] %s143
      %s145 = sshll.u32 %s1, 4
      %s146 = int_to_ptr.hbm [resolvable:$true] %s145
      %148 = dma.vmem_to_hbm [thread:$0]  %s144, 32, %s146, [#allocation4]
    $region13: #{tpu_custom_call.1} parent=1 // pred_fallthru
      _
    // Predicated region
    $region14: #{tpu_custom_call.1} parent=1 // pred_check
      _
    $region15: #{tpu_custom_call.1} parent=1 // pred_check_branch
      %150 = sbr.rel (0) target = $region17
    $region16: #{tpu_custom_call.1} parent=1 // pred_region
      %152 = vsyncadd [#allocation7], 0
      %s154 = sshll.u32 [#allocation6], 4
      %s155 = int_to_ptr.vmem [resolvable:$true] %s154
      %s156 = sshll.u32 %s2, 4
      %s157 = int_to_ptr.hbm [resolvable:$true] %s156
      %159 = dma.vmem_to_hbm [thread:$0]  %s155, 32, %s157, [#allocation7]
    $region17: #{tpu_custom_call.1} parent=1 // pred_fallthru
      _
    // Predicated region
    $region18: #{tpu_custom_call.1} parent=1 // pred_check
      _
    $region19: #{tpu_custom_call.1} parent=1 // pred_check_branch
      %161 = sbr.rel (0) target = $region21
    $region20: #{tpu_custom_call.1} parent=1 // pred_region
      %163 = dma.done [#allocation4], 32
    $region21: #{tpu_custom_call.1} parent=1 // pred_fallthru
      _
    // Predicated region
    $region22: #{tpu_custom_call.1} parent=1 // pred_check
      _
    $region23: #{tpu_custom_call.1} parent=1 // pred_check_branch
      %165 = sbr.rel (0) target = $region25
    $region24: #{tpu_custom_call.1} parent=1 // pred_region
      %167 = dma.done [#allocation7], 32
    $region25: #{tpu_custom_call.1} parent=1 // pred_fallthru
      _
    %168 = vsyncpa [#allocation3], 1
    %169 = vsyncpa [#allocation4], 1
    %170 = vsyncpa [#allocation7], 1

</llo_original>
